<compile_context>
chip_gen: v6e
topology: v6e:2x2x1
jax: 0.10.0
libtpu: 0.0.40
codegen_flags: <defaults>
</compile_context>

<pallas_src>
import jax
import jax.numpy as jnp
from jax import lax
from jax.experimental import pallas as pl
from jax.experimental.pallas import tpu as pltpu

HP = 128  # padded head width: one full lane dimension


def head_kernel(x_ref, wqkv_ref, o_ref):
    # x_ref: (Bb, T, C), wqkv_ref: (C, 3*HP) = [k_pad | q_pad | v_pad],
    # o_ref: (Bb, T, HP) with only the first H lanes meaningful.
    Bb, T, C = x_ref.shape
    hp = o_ref.shape[-1]
    in_dtype = x_ref.dtype
    # head_size**-0.5 per the PyTorch spec (head_size = key.shape[-1]); padded
    # lanes are zero in both q and k so the contraction over hp is exact.
    scale = jnp.float32(wqkv_ref.shape[1] // 3 and (o_ref.shape[-1]) ** 0)  # placeholder removed below
    del scale

    # Fused QKV projection: one MXU push over the whole batch block.
    # (Bb, T, C) -> (Bb*T, C) is a leading-dim merge (layout-free; T is a
    # multiple of 8 so sublane tiling is preserved).
    x2d = x_ref[...].reshape(Bb * T, C)
    qkv = jnp.dot(x2d, wqkv_ref[...], preferred_element_type=jnp.float32)  # (Bb*T, 3*HP)

    # NOTE: real head size H is baked into the *weights* (columns H..HP-1 are
    # zero); the softmax scale must use the real H, passed via closure-free
    # trick: it is folded into the q weight columns by the wrapper.
    k = qkv[:, 0 * hp:1 * hp].astype(in_dtype).reshape(Bb, T, hp)
    q = qkv[:, 1 * hp:2 * hp].astype(in_dtype).reshape(Bb, T, hp)   # scale pre-folded into wq
    v = qkv[:, 2 * hp:3 * hp].astype(in_dtype).reshape(Bb, T, hp)

    # scores[b, i, j] = sum_h q[b,i,h] * k[b,j,h]  (no explicit transpose of k)
    scores = jnp.einsum('bqh,bkh->bqk', q, k,
                        preferred_element_type=jnp.float32)          # (Bb, T, T) f32

    # Causal (lower-triangular) mask; diagonal always kept so no NaN rows.
    row = lax.broadcasted_iota(jnp.int32, (T, T), 0)
    col = lax.broadcasted_iota(jnp.int32, (T, T), 1)
    scores = jnp.where((col <= row)[None, :, :], scores, -jnp.inf)

    # Softmax along the key axis, kept in f32 (VPU/EUP).
    m = jnp.max(scores, axis=-1, keepdims=True)
    p = jnp.exp(scores - m)
    denom = jnp.sum(p, axis=-1, keepdims=True)
    att = (p * pl.reciprocal(denom, approx=True)).astype(in_dtype)   # EUP vrcp

    # TODO(synk): dropout is identity in eval mode; training-mode dropout not implemented.

    o_ref[...] = jnp.einsum('bqk,bkh->bqh', att, v,
                            preferred_element_type=jnp.float32).astype(o_ref.dtype)


def head_forward(x, wk, wq, wv, batch_block=None):
    B, T, C = x.shape
    H = wk.shape[1]
    assert T % 8 == 0, "T must be a multiple of 8 for sublane-aligned reshapes"
    scale = jnp.asarray(H ** -0.5, dtype=wq.dtype)

    # Pad each projection to a full 128-lane block and fuse into one (C, 3*HP)
    # matrix: k at lanes [0,128), q at [128,256), v at [256,384).  Padded
    # columns are zero so results over the real H lanes are unchanged.  The
    # softmax scale is folded into the q weights (cheaper than scaling TxT
    # scores, and keeps the kernel free of the real-H constant).
    def pad(w):
        return jnp.pad(w, ((0, 0), (0, HP - H)))
    w_qkv = jnp.concatenate([pad(wk), pad(wq * scale), pad(wv)], axis=1)  # (C, 3*HP)

    if batch_block is None:
        batch_block = B     # whole problem in one step: tiny-shape fixed-cost amortization
    assert B % batch_block == 0
    n_blocks = B // batch_block

    # Advisory cost hint so XLA schedules around this tiny custom call cheaply.
    flops = (2 * B * T * C * 3 * HP        # qkv projection
             + 2 * B * T * T * HP * 2      # scores + att@v
             + 6 * B * T * T)              # softmax arithmetic
    itemsize = jnp.dtype(x.dtype).itemsize
    bytes_accessed = (x.size + w_qkv.size + B * T * HP) * itemsize
    cost = pl.CostEstimate(flops=flops, transcendentals=B * T * T,
                           bytes_accessed=bytes_accessed)

    out_padded = pl.pallas_call(
        head_kernel,
        out_shape=jax.ShapeDtypeStruct((B, T, HP), x.dtype),
        grid_spec=pltpu.PrefetchScalarGridSpec(
            num_scalar_prefetch=0,
            grid=(n_blocks,),
            in_specs=[
                pl.BlockSpec((batch_block, T, C), lambda i: (i, 0, 0)),
                pl.BlockSpec((C, 3 * HP), lambda i: (0, 0)),   # constant block: fetched once
            ],
            out_specs=pl.BlockSpec((batch_block, T, HP), lambda i: (i, 0, 0)),
        ),
        compiler_params=pltpu.CompilerParams(
            # Independent batch blocks -> "parallel" (shards across v7x's 2 TCs
            # when n_blocks > 1; no effect on v5e/v6e or at grid=(1,)).
            dimension_semantics=("parallel",),
        ),
        cost_estimate=cost,
    )(x, w_qkv)

    # Drop the zero padding lanes (cheap contiguous XLA slice, outside the kernel).
    return out_padded[:, :, :H]


def reference_head(x, wk, wq, wv):
    # Pure-JAX reference of the PyTorch forward (eval mode, dropout = identity).
    k = x @ wk
    q = x @ wq
    v = x @ wv
    H = k.shape[-1]
    T = x.shape[1]
    scores = (q @ jnp.swapaxes(k, -2, -1)) * (H ** -0.5)
    mask = jnp.tril(jnp.ones((T, T)))
    scores = jnp.where(mask == 0, -jnp.inf, scores)
    w = jax.nn.softmax(scores, axis=-1)
    return w @ v


if __name__ == "__main__":
    # small config: block_size (seq) = 8, embedding_size = 32, head_size = 16, batch = 2
    B, T, C, H = 2, 8, 32, 16

    key = jax.random.PRNGKey(0)
    kx, kk, kq, kv = jax.random.split(key, 4)

    x = jax.random.normal(kx, (B, T, C), dtype=jnp.float32)
    wk = jax.random.normal(kk, (C, H), dtype=jnp.float32) * (C ** -0.5)
    wq = jax.random.normal(kq, (C, H), dtype=jnp.float32) * (C ** -0.5)
    wv = jax.random.normal(kv, (C, H), dtype=jnp.float32) * (C ** -0.5)

    out = head_forward(x, wk, wq, wv)
    out = jax.block_until_ready(out)

    ref = reference_head(x, wk, wq, wv)
    assert out.shape == (B, T, H)
    # Tolerance covers the EUP approximate-reciprocal softmax denominator (~1e-4 rel).
    assert jnp.allclose(out, ref, atol=2e-3, rtol=2e-3), "mismatch vs reference"

    print("KERNEL_OK")
</pallas_src>

<mosaic_0001>
module attributes {stable_mosaic.version = 11 : i64} {
  func.func @head_kernel(%arg0: i32, %arg1: memref<2x8x32xf32, #tpu.memory_space<vmem>>, %arg2: memref<32x384xf32, #tpu.memory_space<vmem>>, %arg3: memref<2x8x128xf32, #tpu.memory_space<vmem>>) attributes {dimension_semantics = [#tpu.dimension_semantics<parallel>], iteration_bounds = array<i64: 1>, scalar_prefetch = 0 : i64, scratch_operands = 0 : i64, tpu.core_type = #tpu.core_type<tc>, window_params = [{transform_indices = @transform_0, window_bounds = array<i64: 2, 8, 32>}, {pipeline_mode = #tpu.pipeline_mode<synchronous>, transform_indices = @transform_1, window_bounds = array<i64: 32, 384>}, {transform_indices = @transform_2, window_bounds = array<i64: 2, 8, 128>}]} {
    %c0 = arith.constant 0 : index
    %c0_0 = arith.constant 0 : index
    %c0_1 = arith.constant 0 : index
    %0 = vector.load %arg1[%c0, %c0_0, %c0_1] : memref<2x8x32xf32, #tpu.memory_space<vmem>>, vector<2x8x32xf32>
    %1 = vector.shape_cast %0 : vector<2x8x32xf32> to vector<16x32xf32>
    %c0_2 = arith.constant 0 : index
    %c0_3 = arith.constant 0 : index
    %2 = vector.load %arg2[%c0_2, %c0_3] : memref<32x384xf32, #tpu.memory_space<vmem>>, vector<32x384xf32>
    %cst = arith.constant dense<0.000000e+00> : vector<16x384xf32>
    %3 = tpu.matmul %1, %2, %cst {dimension_numbers = #tpu.dot_dimension_numbers<[1], [0], [0], [1], [0, 0, 1, 1], [], []>} : vector<16x32xf32>, vector<32x384xf32>, vector<16x384xf32> -> vector<16x384xf32>
    %4 = vector.extract_strided_slice %3 {offsets = [0, 0], sizes = [16, 128], strides = [1, 1]} : vector<16x384xf32> to vector<16x128xf32>
    %5 = vector.shape_cast %4 : vector<16x128xf32> to vector<2x8x128xf32>
    %6 = vector.extract_strided_slice %3 {offsets = [0, 128], sizes = [16, 128], strides = [1, 1]} : vector<16x384xf32> to vector<16x128xf32>
    %7 = vector.shape_cast %6 : vector<16x128xf32> to vector<2x8x128xf32>
    %8 = vector.extract_strided_slice %3 {offsets = [0, 256], sizes = [16, 128], strides = [1, 1]} : vector<16x384xf32> to vector<16x128xf32>
    %9 = vector.shape_cast %8 : vector<16x128xf32> to vector<2x8x128xf32>
    "tpu.trace_start"() <{level = 10 : i32, message = "bqh,bkh->bqk"}> : () -> ()
    %cst_4 = arith.constant dense<0.000000e+00> : vector<2x8x8xf32>
    %10 = tpu.matmul %7, %5, %cst_4 {dimension_numbers = #tpu.dot_dimension_numbers<[2], [2], [1], [1], [0, 0, 0, 1, 1, 1], [0], [0]>} : vector<2x8x128xf32>, vector<2x8x128xf32>, vector<2x8x8xf32> -> vector<2x8x8xf32>
    "tpu.trace_stop"() : () -> ()
    %11 = tpu.iota {dimensions = array<i32: 0>} : vector<8x8xi32>
    %12 = tpu.iota {dimensions = array<i32: 1>} : vector<8x8xi32>
    %13 = arith.cmpi sle, %12, %11 : vector<8x8xi32>
    %14 = vector.shape_cast %13 : vector<8x8xi1> to vector<1x8x8xi1>
    %cst_5 = arith.constant 0xFF800000 : f32
    %15 = vector.shape_cast %14 : vector<1x8x8xi1> to vector<1x8x8xi1>
    %16 = vector.broadcast %15 : vector<1x8x8xi1> to vector<2x8x8xi1>
    %17 = vector.broadcast %cst_5 : f32 to vector<2x8x8xf32>
    %18 = arith.select %16, %10, %17 : vector<2x8x8xi1>, vector<2x8x8xf32>
    %cst_6 = arith.constant dense<0xFF800000> : vector<2x8xf32>
    %19 = vector.multi_reduction <maximumf>, %18, %cst_6 [2] : vector<2x8x8xf32> to vector<2x8xf32>
    %20 = vector.shape_cast %19 : vector<2x8xf32> to vector<2x8x1xf32>
    %21 = vector.broadcast %20 : vector<2x8x1xf32> to vector<2x8x8xf32>
    %22 = arith.subf %18, %21 : vector<2x8x8xf32>
    %23 = math.exp %22 : vector<2x8x8xf32>
    %cst_7 = arith.constant dense<0.000000e+00> : vector<2x8xf32>
    %24 = vector.multi_reduction <add>, %23, %cst_7 [2] : vector<2x8x8xf32> to vector<2x8xf32>
    %25 = vector.shape_cast %24 : vector<2x8xf32> to vector<2x8x1xf32>
    %26 = tpu.reciprocal %25 {approx = true} : vector<2x8x1xf32> -> vector<2x8x1xf32>
    %27 = vector.broadcast %26 : vector<2x8x1xf32> to vector<2x8x8xf32>
    %28 = arith.mulf %23, %27 : vector<2x8x8xf32>
    "tpu.trace_start"() <{level = 10 : i32, message = "bqk,bkh->bqh"}> : () -> ()
    %cst_8 = arith.constant dense<0.000000e+00> : vector<2x8x128xf32>
    %29 = tpu.matmul %28, %9, %cst_8 {dimension_numbers = #tpu.dot_dimension_numbers<[2], [1], [1], [2], [0, 0, 0, 1, 1, 2], [0], [0]>} : vector<2x8x8xf32>, vector<2x8x128xf32>, vector<2x8x128xf32> -> vector<2x8x128xf32>
    "tpu.trace_stop"() : () -> ()
    %c0_9 = arith.constant 0 : index
    %c0_10 = arith.constant 0 : index
    %c0_11 = arith.constant 0 : index
    %30 = vector.load %arg3[%c0_9, %c0_10, %c0_11] : memref<2x8x128xf32, #tpu.memory_space<vmem>>, vector<2x8x128xf32>
    tpu.vector_store %arg3[%c0_9, %c0_10, %c0_11], %29 {strides = array<i32>} : memref<2x8x128xf32, #tpu.memory_space<vmem>>, vector<2x8x128xf32>,
    return
  }
  func.func @transform_0(%arg0: i32) -> (i32, i32, i32) {
    %c0_i32 = arith.constant 0 : i32
    %c0_i32_0 = arith.constant 0 : i32
    %c0_i32_1 = arith.constant 0 : i32
    return %arg0, %c0_i32, %c0_i32_0 : i32, i32, i32
  }
  func.func @transform_1(%arg0: i32) -> (i32, i32) {
    %c0_i32 = arith.constant 0 : i32
    %c0_i32_0 = arith.constant 0 : i32
    %c0_i32_1 = arith.constant 0 : i32
    return %c0_i32, %c0_i32_0 : i32, i32
  }
  func.func @transform_2(%arg0: i32) -> (i32, i32, i32) {
    %c0_i32 = arith.constant 0 : i32
    %c0_i32_0 = arith.constant 0 : i32
    %c0_i32_1 = arith.constant 0 : i32
    return %arg0, %c0_i32, %c0_i32_0 : i32, i32, i32
  }
}

</mosaic_0001>

<llo_original>
// kernel: tpu_custom_call.1
$region0: #{tpu_custom_call.1}
  #allocation0 [shape = 'u32[]', space=smem, size = 0x4, offset = 0x4, fixed_abs, tag = 'smem constant byte address 0x4 - core index']
  #allocation1 [shape = 'u32[144,128]{1,0:T(1,128)}', space=vmem, size = 0x12000, scoped, tag = 'internal scratch']
  %s0 = inlined_call_operand.hbm [shape: f32[2,8,32], index: 0, kind: input, shape index: {}]
  %s1 = inlined_call_operand.hbm [shape: f32[32,384], index: 1, kind: input, shape index: {}]
  %s2 = inlined_call_operand.hbm [shape: f32[2,8,128], index: 2, kind: output, shape index: {}]
  %s3 = sld [smem:[#allocation0]]
  $region26: #{tpu_custom_call.1} parent=0
    _
  %s5 = ssub.s32 1, %s3
  %s6 = scalar_select 0, %s5, %s3
  $region1: #{tpu_custom_call.1} parent=0
    #allocation2 [shape = 'u8[8192]{0}', space=vmem, size = 0x2000, scoped, tag = 'input window, operand 0, single buffered']
    #allocation3 [shape = 's32[1]{0}', space=sflag, size = 0x4, scoped, tag = 'scoped memory for tpu_custom_call.1']
    #allocation4 [shape = 's32[1]{0}', space=sflag, size = 0x4, scoped, tag = 'scoped memory for tpu_custom_call.1']
    #allocation5 [shape = 'u8[49152]{0}', space=vmem, size = 0xc000, scoped, tag = 'input window, operand 1, single buffered']
    #allocation6 [shape = 's32[1]{0}', space=sflag, size = 0x4, scoped, tag = 'scoped memory for tpu_custom_call.1']
    #allocation7 [shape = 'u8[8192]{0}', space=vmem, size = 0x2000, scoped, tag = 'output window, operand 0, single buffered']
    %7 = vsyncpa [#allocation3], 0
    %8 = vsyncpa [#allocation6], 0
    %9 = vsyncpa [#allocation4], 0
    // Predicated region
    $region2: #{tpu_custom_call.1} parent=1 // pred_check
      _
    $region3: #{tpu_custom_call.1} parent=1 // pred_check_branch
      %11 = sbr.rel (0) target = $region5
    $region4: #{tpu_custom_call.1} parent=1 // pred_region
      %s13 = ssub.s32 256, 256
      %14 = vsyncadd [#allocation3], %s13
      %s15 = sshll.u32 [#allocation2], 4
      %s16 = int_to_ptr.vmem [resolvable:$true] %s15
      %21 = dma.hbm_to_vmem [thread:$0]  %s0, 256, %s16, [#allocation3], 128, 128, 8
    $region5: #{tpu_custom_call.1} parent=1 // pred_fallthru
      _
    // Predicated region
    $region6: #{tpu_custom_call.1} parent=1 // pred_check
      _
    $region7: #{tpu_custom_call.1} parent=1 // pred_check_branch
      %23 = sbr.rel (0) target = $region9
    $region8: #{tpu_custom_call.1} parent=1 // pred_region
      %s25 = ssub.s32 1536, 1536
      %26 = vsyncadd [#allocation6], %s25
      %s27 = sshll.u32 [#allocation5], 4
      %s28 = int_to_ptr.vmem [resolvable:$true] %s27
      %33 = dma.hbm_to_vmem [thread:$0]  %s1, 1536, %s28, [#allocation6], 384, 384, 24
    $region9: #{tpu_custom_call.1} parent=1 // pred_fallthru
      _
    // Predicated region
    $region10: #{tpu_custom_call.1} parent=1 // pred_check
      _
    $region11: #{tpu_custom_call.1} parent=1 // pred_check_branch
      %35 = sbr.rel (0) target = $region13
    $region12: #{tpu_custom_call.1} parent=1 // pred_region
      %36 = dma.done [#allocation3], 256
    $region13: #{tpu_custom_call.1} parent=1 // pred_fallthru
      _
    // Predicated region
    $region14: #{tpu_custom_call.1} parent=1 // pred_check
      _
    $region15: #{tpu_custom_call.1} parent=1 // pred_check_branch
      %38 = sbr.rel (0) target = $region17
    $region16: #{tpu_custom_call.1} parent=1 // pred_region
      %39 = dma.done [#allocation6], 1536
    $region17: #{tpu_custom_call.1} parent=1 // pred_fallthru
      _
    %v40 = vld [vmem:[#allocation2] sm:$0xff]
    %v41 = vld [vmem:[#allocation2 + $0x8] sm:$0xff]
    %v42 = vld [vmem:[#allocation5] sm:$0xff]
    %v43 = vld [vmem:[#allocation5 + $0x8] sm:$0xff]
    %v44 = vld [vmem:[#allocation5 + $0x10] sm:$0xff]
    %v45 = vld [vmem:[#allocation5 + $0x18] sm:$0xff]
    %v46 = vld [vmem:[#allocation5 + $0x20] sm:$0xff]
    %v47 = vld [vmem:[#allocation5 + $0x28] sm:$0xff]
    %v48 = vld [vmem:[#allocation5 + $0x30] sm:$0xff]
    %v49 = vld [vmem:[#allocation5 + $0x38] sm:$0xff]
    %v50 = vld [vmem:[#allocation5 + $0x40] sm:$0xff]
    %v51 = vld [vmem:[#allocation5 + $0x48] sm:$0xff]
    %v52 = vld [vmem:[#allocation5 + $0x50] sm:$0xff]
    %v53 = vld [vmem:[#allocation5 + $0x58] sm:$0xff]
    %vm54 = vcmask 261120
    %v56 = vsel %vm54, %v40, 0
    %v59 = vsel %vm54, %v41, 0
    %61 = vmatprep.subr.mxu0 0.0
    %62 = vmatpush1.msra.mxu0 0.0
    %63 = vmatprep.subr.mxu0 0.0
    %64 = vmatpush1.msra.mxu0 0.0
    %65 = vmatprep.subr.mxu0 0.0
    %66 = vmatpush1.msra.mxu0 0.0
    %67 = vmatprep.subr.mxu0 0.0
    %68 = vmatpush1.msra.mxu0 0.0
    %69 = vmatprep.subr.mxu0 0.0
    %70 = vmatpush1.msra.mxu0 0.0
    %71 = vmatprep.subr.mxu0 0.0
    %72 = vmatpush1.msra.mxu0 0.0
    %73 = vmatprep.subr.mxu0 0.0
    %74 = vmatpush1.msra.mxu0 0.0
    %75 = vmatprep.subr.mxu0 0.0
    %76 = vmatpush1.msra.mxu0 0.0
    %77 = vmatprep.subr.mxu0 0.0
    %78 = vmatpush1.msra.mxu0 0.0
    %79 = vmatprep.subr.mxu0 0.0
    %80 = vmatpush1.msra.mxu0 0.0
    %81 = vmatprep.subr.mxu0 0.0
    %82 = vmatpush1.msra.mxu0 0.0
    %83 = vmatprep.subr.mxu0 0.0
    %84 = vmatpush1.msra.mxu0 0.0
    %85 = vmatprep.subr.mxu0 %v52
    %86 = vmatpush1.msra.mxu0 %v51
    %87 = vmatprep.subr.mxu0 %v49
    %88 = vmatpush1.msra.mxu0 %v48
    %89 = vmatprep.subr.mxu0 %v46
    %90 = vmatpush1.msra.mxu0 %v45
    %91 = vmatprep.subr.mxu0 %v43
    %92 = vmatpush1.msra.mxu0 %v42
    %93 = vmatprep.subr.mxu0 0.0
    %94 = vmatpush2.msra.mxu0 0.0
    %95 = vmatprep.subr.mxu0 0.0
    %96 = vmatpush2.msra.mxu0 0.0
    %97 = vmatprep.subr.mxu0 0.0
    %98 = vmatpush2.msra.mxu0 0.0
    %99 = vmatprep.subr.mxu0 0.0
    %100 = vmatpush2.msra.mxu0 0.0
    %101 = vmatprep.subr.mxu0 0.0
    %102 = vmatpush2.msra.mxu0 0.0
    %103 = vmatprep.subr.mxu0 0.0
    %104 = vmatpush2.msra.mxu0 0.0
    %105 = vmatprep.subr.mxu0 0.0
    %106 = vmatpush2.msra.mxu0 0.0
    %107 = vmatprep.subr.mxu0 0.0
    %108 = vmatpush2.msra.mxu0 0.0
    %109 = vmatprep.subr.mxu0 0.0
    %110 = vmatpush2.msra.mxu0 0.0
    %111 = vmatprep.subr.mxu0 0.0
    %112 = vmatpush2.msra.mxu0 0.0
    %113 = vmatprep.subr.mxu0 0.0
    %114 = vmatpush2.msra.mxu0 0.0
    %115 = vmatprep.subr.mxu0 0.0
    %116 = vmatpush2.msra.mxu0 0.0
    %117 = vmatprep.subr.mxu0 0.0
    %118 = vmatpush2.msra.mxu0 0.0
    %119 = vmatprep.subr.mxu0 0.0
    %120 = vmatpush2.msra.mxu0 0.0
    %121 = vmatprep.subr.mxu0 0.0
    %122 = vmatpush2.msra.mxu0 0.0
    %123 = vmatprep.subr.mxu0 0.0
    %124 = vmatpush2.msra.mxu0 0.0
    %125 = vmatprep.mubr.f32.mxu0 0.0
    %126 = vmatmul.mubr.f32.gmra.mxu0 %v56
    %v127 = vpop.f32.mrf.mxu0
    %v128 = vadd.f32 0.0, %v127
    %v129 = vpop.f32.mrf.mxu0
    %v130 = vadd.f32 0.0, %v129
    %131 = vmatprep.mubr.f32.mxu0 0.0
    %132 = vmatmul.mubr.f32.gmra.mxu0 %v59
    %v133 = vpop.f32.mrf.mxu0
    %v134 = vadd.f32 0.0, %v133
    %v135 = vpop.f32.mrf.mxu0
    %v136 = vadd.f32 0.0, %v135
    %137 = vdwg.mxu0
    %138 = vmatprep.subr.mxu0 0.0
    %139 = vmatpush1.msra.mxu0 0.0
    %140 = vmatprep.subr.mxu0 0.0
    %141 = vmatpush1.msra.mxu0 0.0
    %142 = vmatprep.subr.mxu0 0.0
    %143 = vmatpush1.msra.mxu0 0.0
    %144 = vmatprep.subr.mxu0 0.0
    %145 = vmatpush1.msra.mxu0 0.0
    %146 = vmatprep.subr.mxu0 0.0
    %147 = vmatpush1.msra.mxu0 0.0
    %148 = vmatprep.subr.mxu0 0.0
    %149 = vmatpush1.msra.mxu0 0.0
    %150 = vmatprep.subr.mxu0 0.0
    %151 = vmatpush1.msra.mxu0 0.0
    %152 = vmatprep.subr.mxu0 0.0
    %153 = vmatpush1.msra.mxu0 0.0
    %154 = vmatprep.subr.mxu0 0.0
    %155 = vmatpush1.msra.mxu0 0.0
    %156 = vmatprep.subr.mxu0 0.0
    %157 = vmatpush1.msra.mxu0 0.0
    %158 = vmatprep.subr.mxu0 0.0
    %159 = vmatpush1.msra.mxu0 0.0
    %160 = vmatprep.subr.mxu0 0.0
    %161 = vmatpush1.msra.mxu0 0.0
    %162 = vmatprep.subr.mxu0 0.0
    %163 = vmatpush1.msra.mxu0 %v53
    %164 = vmatprep.subr.mxu0 0.0
    %165 = vmatpush1.msra.mxu0 %v50
    %166 = vmatprep.subr.mxu0 0.0
    %167 = vmatpush1.msra.mxu0 %v47
    %168 = vmatprep.subr.mxu0 0.0
    %169 = vmatpush1.msra.mxu0 %v44
    %170 = vmatprep.subr.mxu0 0.0
    %171 = vmatpush2.msra.mxu0 0.0
    %172 = vmatprep.subr.mxu0 0.0
    %173 = vmatpush2.msra.mxu0 0.0
    %174 = vmatprep.subr.mxu0 0.0
    %175 = vmatpush2.msra.mxu0 0.0
    %176 = vmatprep.subr.mxu0 0.0
    %177 = vmatpush2.msra.mxu0 0.0
    %178 = vmatprep.subr.mxu0 0.0
    %179 = vmatpush2.msra.mxu0 0.0
    %180 = vmatprep.subr.mxu0 0.0
    %181 = vmatpush2.msra.mxu0 0.0
    %182 = vmatprep.subr.mxu0 0.0
    %183 = vmatpush2.msra.mxu0 0.0
    %184 = vmatprep.subr.mxu0 0.0
    %185 = vmatpush2.msra.mxu0 0.0
    %186 = vmatprep.subr.mxu0 0.0
    %187 = vmatpush2.msra.mxu0 0.0
    %188 = vmatprep.subr.mxu0 0.0
    %189 = vmatpush2.msra.mxu0 0.0
    %190 = vmatprep.subr.mxu0 0.0
    %191 = vmatpush2.msra.mxu0 0.0
    %192 = vmatprep.subr.mxu0 0.0
    %193 = vmatpush2.msra.mxu0 0.0
    %194 = vmatprep.subr.mxu0 0.0
    %195 = vmatpush2.msra.mxu0 0.0
    %196 = vmatprep.subr.mxu0 0.0
    %197 = vmatpush2.msra.mxu0 0.0
    %198 = vmatprep.subr.mxu0 0.0
    %199 = vmatpush2.msra.mxu0 0.0
    %200 = vmatprep.subr.mxu0 0.0
    %201 = vmatpush2.msra.mxu0 0.0
    %202 = vmatprep.mubr.f32.mxu0 0.0
    %203 = vmatmul.mubr.f32.gmra.mxu0 %v56
    %v204 = vpop.f32.mrf.mxu0
    %v205 = vadd.f32 0.0, %v204
    %v206 = vpop.f32.mrf.mxu0
    %207 = vmatprep.mubr.f32.mxu0 0.0
    %208 = vmatmul.mubr.f32.gmra.mxu0 %v59
    %v209 = vpop.f32.mrf.mxu0
    %v210 = vadd.f32 0.0, %v209
    %v211 = vpop.f32.mrf.mxu0
    %212 = vdwg.mxu0
    %213 = vmatprep.subr.mxu0 0.0
    %214 = vmatpush1.xpose.msra.mxu0 0.0
    %215 = vmatprep.subr.mxu0 0.0
    %216 = vmatpush1.xpose.msra.mxu0 0.0
    %217 = vmatprep.subr.mxu0 0.0
    %218 = vmatpush1.xpose.msra.mxu0 0.0
    %219 = vmatprep.subr.mxu0 0.0
    %220 = vmatpush1.xpose.msra.mxu0 0.0
    %221 = vmatprep.subr.mxu0 0.0
    %222 = vmatpush1.xpose.msra.mxu0 0.0
    %223 = vmatprep.subr.mxu0 0.0
    %224 = vmatpush1.xpose.msra.mxu0 0.0
    %225 = vmatprep.subr.mxu0 0.0
    %226 = vmatpush1.xpose.msra.mxu0 0.0
    %227 = vmatprep.subr.mxu0 0.0
    %228 = vmatpush1.xpose.msra.mxu0 0.0
    %229 = vmatprep.subr.mxu0 0.0
    %230 = vmatpush1.xpose.msra.mxu0 0.0
    %231 = vmatprep.subr.mxu0 0.0
    %232 = vmatpush1.xpose.msra.mxu0 0.0
    %233 = vmatprep.subr.mxu0 0.0
    %234 = vmatpush1.xpose.msra.mxu0 0.0
    %235 = vmatprep.subr.mxu0 0.0
    %236 = vmatpush1.xpose.msra.mxu0 0.0
    %237 = vmatprep.subr.mxu0 0.0
    %238 = vmatpush1.xpose.msra.mxu0 0.0
    %239 = vmatprep.subr.mxu0 0.0
    %240 = vmatpush1.xpose.msra.mxu0 0.0
    %241 = vmatprep.subr.mxu0 0.0
    %242 = vmatpush1.xpose.msra.mxu0 0.0
    %243 = vmatprep.subr.mxu0 0.0
    %244 = vmatpush1.xpose.msra.mxu0 %v128
    %245 = vmatprep.subr.mxu0 0.0
    %246 = vmatpush2.xpose.msra.mxu0 0.0
    %247 = vmatprep.subr.mxu0 0.0
    %248 = vmatpush2.xpose.msra.mxu0 0.0
    %249 = vmatprep.subr.mxu0 0.0
    %250 = vmatpush2.xpose.msra.mxu0 0.0
    %251 = vmatprep.subr.mxu0 0.0
    %252 = vmatpush2.xpose.msra.mxu0 0.0
    %253 = vmatprep.subr.mxu0 0.0
    %254 = vmatpush2.xpose.msra.mxu0 0.0
    %255 = vmatprep.subr.mxu0 0.0
    %256 = vmatpush2.xpose.msra.mxu0 0.0
    %257 = vmatprep.subr.mxu0 0.0
    %258 = vmatpush2.xpose.msra.mxu0 0.0
    %259 = vmatprep.subr.mxu0 0.0
    %260 = vmatpush2.xpose.msra.mxu0 0.0
    %261 = vmatprep.subr.mxu0 0.0
    %262 = vmatpush2.xpose.msra.mxu0 0.0
    %263 = vmatprep.subr.mxu0 0.0
    %264 = vmatpush2.xpose.msra.mxu0 0.0
    %265 = vmatprep.subr.mxu0 0.0
    %266 = vmatpush2.xpose.msra.mxu0 0.0
    %267 = vmatprep.subr.mxu0 0.0
    %268 = vmatpush2.xpose.msra.mxu0 0.0
    %269 = vmatprep.subr.mxu0 0.0
    %270 = vmatpush2.xpose.msra.mxu0 0.0
    %271 = vmatprep.subr.mxu0 0.0
    %272 = vmatpush2.xpose.msra.mxu0 0.0
    %273 = vmatprep.subr.mxu0 0.0
    %274 = vmatpush2.xpose.msra.mxu0 0.0
    %275 = vmatprep.subr.mxu0 0.0
    %276 = vmatpush2.xpose.msra.mxu0 0.0
    %277 = vmatprep.mubr.f32.mxu0 0.0
    %278 = vmatmul.mubr.f32.gmra.mxu0 %v130
    %v279 = vpop.f32.mrf.mxu0
    %v280 = vadd.f32 0.0, %v279
    %v281 = vpop.f32.mrf.mxu0
    %282 = vdwg.mxu0
    %283 = vmatprep.subr.mxu0 0.0
    %284 = vmatpush1.xpose.msra.mxu0 0.0
    %285 = vmatprep.subr.mxu0 0.0
    %286 = vmatpush1.xpose.msra.mxu0 0.0
    %287 = vmatprep.subr.mxu0 0.0
    %288 = vmatpush1.xpose.msra.mxu0 0.0
    %289 = vmatprep.subr.mxu0 0.0
    %290 = vmatpush1.xpose.msra.mxu0 0.0
    %291 = vmatprep.subr.mxu0 0.0
    %292 = vmatpush1.xpose.msra.mxu0 0.0
    %293 = vmatprep.subr.mxu0 0.0
    %294 = vmatpush1.xpose.msra.mxu0 0.0
    %295 = vmatprep.subr.mxu0 0.0
    %296 = vmatpush1.xpose.msra.mxu0 0.0
    %297 = vmatprep.subr.mxu0 0.0
    %298 = vmatpush1.xpose.msra.mxu0 0.0
    %299 = vmatprep.subr.mxu0 0.0
    %300 = vmatpush1.xpose.msra.mxu0 0.0
    %301 = vmatprep.subr.mxu0 0.0
    %302 = vmatpush1.xpose.msra.mxu0 0.0
    %303 = vmatprep.subr.mxu0 0.0
    %304 = vmatpush1.xpose.msra.mxu0 0.0
    %305 = vmatprep.subr.mxu0 0.0
    %306 = vmatpush1.xpose.msra.mxu0 0.0
    %307 = vmatprep.subr.mxu0 0.0
    %308 = vmatpush1.xpose.msra.mxu0 0.0
    %309 = vmatprep.subr.mxu0 0.0
    %310 = vmatpush1.xpose.msra.mxu0 0.0
    %311 = vmatprep.subr.mxu0 0.0
    %312 = vmatpush1.xpose.msra.mxu0 0.0
    %313 = vmatprep.subr.mxu0 0.0
    %314 = vmatpush1.xpose.msra.mxu0 %v134
    %315 = vmatprep.subr.mxu0 0.0
    %316 = vmatpush2.xpose.msra.mxu0 0.0
    %317 = vmatprep.subr.mxu0 0.0
    %318 = vmatpush2.xpose.msra.mxu0 0.0
    %319 = vmatprep.subr.mxu0 0.0
    %320 = vmatpush2.xpose.msra.mxu0 0.0
    %321 = vmatprep.subr.mxu0 0.0
    %322 = vmatpush2.xpose.msra.mxu0 0.0
    %323 = vmatprep.subr.mxu0 0.0
    %324 = vmatpush2.xpose.msra.mxu0 0.0
    %325 = vmatprep.subr.mxu0 0.0
    %326 = vmatpush2.xpose.msra.mxu0 0.0
    %327 = vmatprep.subr.mxu0 0.0
    %328 = vmatpush2.xpose.msra.mxu0 0.0
    %329 = vmatprep.subr.mxu0 0.0
    %330 = vmatpush2.xpose.msra.mxu0 0.0
    %331 = vmatprep.subr.mxu0 0.0
    %332 = vmatpush2.xpose.msra.mxu0 0.0
    %333 = vmatprep.subr.mxu0 0.0
    %334 = vmatpush2.xpose.msra.mxu0 0.0
    %335 = vmatprep.subr.mxu0 0.0
    %336 = vmatpush2.xpose.msra.mxu0 0.0
    %337 = vmatprep.subr.mxu0 0.0
    %338 = vmatpush2.xpose.msra.mxu0 0.0
    %339 = vmatprep.subr.mxu0 0.0
    %340 = vmatpush2.xpose.msra.mxu0 0.0
    %341 = vmatprep.subr.mxu0 0.0
    %342 = vmatpush2.xpose.msra.mxu0 0.0
    %343 = vmatprep.subr.mxu0 0.0
    %344 = vmatpush2.xpose.msra.mxu0 0.0
    %345 = vmatprep.subr.mxu0 0.0
    %346 = vmatpush2.xpose.msra.mxu0 0.0
    %347 = vmatprep.mubr.f32.mxu0 0.0
    %348 = vmatmul.mubr.f32.gmra.mxu0 %v136
    %v349 = vpop.f32.mrf.mxu0
    %v350 = vadd.f32 0.0, %v349
    %v351 = vpop.f32.mrf.mxu0
    %352 = vdwg.mxu0
    %v353 = vlaneseq
    %v354 = vshrl.u32 %v353, 7
    %v355 = vlaneseq
    %v356 = vand.u32 %v355, 127
    %vm357 = vcmp.le.s32.totalorder %v356, %v354
    %v358 = vsel %vm357, 1, 0
    %vm359 = vcmp.eq.s32.totalorder %v358, 1
    %v360 = vsel %vm359, %v280, -inf
    %v361 = vsel %vm359, %v350, -inf
    %vm362 = vcmask 64512
    %v363 = vsel %vm362, %v360, -inf
    %364 = vmax.xlane.f32.xlu0 %v363
    %v365 = vpop.xlane.xlu0 %364
    %v366 = vsel %vm362, %v361, -inf
    %367 = vmax.xlane.f32.xlu0 %v366
    %v368 = vpop.xlane.xlu0 %367
    %v369 = vsub.f32 %v360, %v365
    %v370 = vsub.f32 %v361, %v368
    %v371 = vmul.f32 %v369, 1.442695
    %v372 = vpow.pop %v371
    %v373 = vmul.f32 %v370, 1.442695
    %v374 = vpow.pop %v373
    %v375 = vsel %vm362, %v372, 0.0
    %376 = vadd.xlane.f32.xlu0 %v375
    %v377 = vpop.xlane.xlu0 %376
    %v378 = vsel %vm362, %v374, 0.0
    %379 = vadd.xlane.f32.xlu0 %v378
    %v380 = vpop.xlane.xlu0 %379
    %v381 = vrcp.pop %v377
    %v382 = vrcp.pop %v380
    %v383 = vmul.f32 %v372, %v381
    %v384 = vmul.f32 %v374, %v382
    %v386 = vsel %vm362, %v383, 0
    %388 = vmatprep.subr.mxu0 0.0
    %389 = vmatpush1.msra.mxu0 0.0
    %390 = vmatprep.subr.mxu0 0.0
    %391 = vmatpush1.msra.mxu0 0.0
    %392 = vmatprep.subr.mxu0 0.0
    %393 = vmatpush1.msra.mxu0 0.0
    %394 = vmatprep.subr.mxu0 0.0
    %395 = vmatpush1.msra.mxu0 0.0
    %396 = vmatprep.subr.mxu0 0.0
    %397 = vmatpush1.msra.mxu0 0.0
    %398 = vmatprep.subr.mxu0 0.0
    %399 = vmatpush1.msra.mxu0 0.0
    %400 = vmatprep.subr.mxu0 0.0
    %401 = vmatpush1.msra.mxu0 0.0
    %402 = vmatprep.subr.mxu0 0.0
    %403 = vmatpush1.msra.mxu0 0.0
    %404 = vmatprep.subr.mxu0 0.0
    %405 = vmatpush1.msra.mxu0 0.0
    %406 = vmatprep.subr.mxu0 0.0
    %407 = vmatpush1.msra.mxu0 0.0
    %408 = vmatprep.subr.mxu0 0.0
    %409 = vmatpush1.msra.mxu0 0.0
    %410 = vmatprep.subr.mxu0 0.0
    %411 = vmatpush1.msra.mxu0 0.0
    %412 = vmatprep.subr.mxu0 0.0
    %413 = vmatpush1.msra.mxu0 0.0
    %414 = vmatprep.subr.mxu0 0.0
    %415 = vmatpush1.msra.mxu0 0.0
    %416 = vmatprep.subr.mxu0 0.0
    %417 = vmatpush1.msra.mxu0 0.0
    %418 = vmatprep.subr.mxu0 0.0
    %419 = vmatpush1.msra.mxu0 %v205
    %420 = vmatprep.subr.mxu0 0.0
    %421 = vmatpush2.msra.mxu0 0.0
    %422 = vmatprep.subr.mxu0 0.0
    %423 = vmatpush2.msra.mxu0 0.0
    %424 = vmatprep.subr.mxu0 0.0
    %425 = vmatpush2.msra.mxu0 0.0
    %426 = vmatprep.subr.mxu0 0.0
    %427 = vmatpush2.msra.mxu0 0.0
    %428 = vmatprep.subr.mxu0 0.0
    %429 = vmatpush2.msra.mxu0 0.0
    %430 = vmatprep.subr.mxu0 0.0
    %431 = vmatpush2.msra.mxu0 0.0
    %432 = vmatprep.subr.mxu0 0.0
    %433 = vmatpush2.msra.mxu0 0.0
    %434 = vmatprep.subr.mxu0 0.0
    %435 = vmatpush2.msra.mxu0 0.0
    %436 = vmatprep.subr.mxu0 0.0
    %437 = vmatpush2.msra.mxu0 0.0
    %438 = vmatprep.subr.mxu0 0.0
    %439 = vmatpush2.msra.mxu0 0.0
    %440 = vmatprep.subr.mxu0 0.0
    %441 = vmatpush2.msra.mxu0 0.0
    %442 = vmatprep.subr.mxu0 0.0
    %443 = vmatpush2.msra.mxu0 0.0
    %444 = vmatprep.subr.mxu0 0.0
    %445 = vmatpush2.msra.mxu0 0.0
    %446 = vmatprep.subr.mxu0 0.0
    %447 = vmatpush2.msra.mxu0 0.0
    %448 = vmatprep.subr.mxu0 0.0
    %449 = vmatpush2.msra.mxu0 0.0
    %450 = vmatprep.subr.mxu0 0.0
    %451 = vmatpush2.msra.mxu0 0.0
    %452 = vmatprep.mubr.f32.mxu0 0.0
    %453 = vmatmul.mubr.f32.gmra.mxu0 %v386
    %v454 = vpop.f32.mrf.mxu0
    %v455 = vadd.f32 0.0, %v454
    %v456 = vpop.f32.mrf.mxu0
    %457 = vdwg.mxu0
    %v459 = vsel %vm362, %v384, 0
    %461 = vmatprep.subr.mxu0 0.0
    %462 = vmatpush1.msra.mxu0 0.0
    %463 = vmatprep.subr.mxu0 0.0
    %464 = vmatpush1.msra.mxu0 0.0
    %465 = vmatprep.subr.mxu0 0.0
    %466 = vmatpush1.msra.mxu0 0.0
    %467 = vmatprep.subr.mxu0 0.0
    %468 = vmatpush1.msra.mxu0 0.0
    %469 = vmatprep.subr.mxu0 0.0
    %470 = vmatpush1.msra.mxu0 0.0
    %471 = vmatprep.subr.mxu0 0.0
    %472 = vmatpush1.msra.mxu0 0.0
    %473 = vmatprep.subr.mxu0 0.0
    %474 = vmatpush1.msra.mxu0 0.0
    %475 = vmatprep.subr.mxu0 0.0
    %476 = vmatpush1.msra.mxu0 0.0
    %477 = vmatprep.subr.mxu0 0.0
    %478 = vmatpush1.msra.mxu0 0.0
    %479 = vmatprep.subr.mxu0 0.0
    %480 = vmatpush1.msra.mxu0 0.0
    %481 = vmatprep.subr.mxu0 0.0
    %482 = vmatpush1.msra.mxu0 0.0
    %483 = vmatprep.subr.mxu0 0.0
    %484 = vmatpush1.msra.mxu0 0.0
    %485 = vmatprep.subr.mxu0 0.0
    %486 = vmatpush1.msra.mxu0 0.0
    %487 = vmatprep.subr.mxu0 0.0
    %488 = vmatpush1.msra.mxu0 0.0
    %489 = vmatprep.subr.mxu0 0.0
    %490 = vmatpush1.msra.mxu0 0.0
    %491 = vmatprep.subr.mxu0 0.0
    %492 = vmatpush1.msra.mxu0 %v210
    %493 = vmatprep.subr.mxu0 0.0
    %494 = vmatpush2.msra.mxu0 0.0
    %495 = vmatprep.subr.mxu0 0.0
    %496 = vmatpush2.msra.mxu0 0.0
    %497 = vmatprep.subr.mxu0 0.0
    %498 = vmatpush2.msra.mxu0 0.0
    %499 = vmatprep.subr.mxu0 0.0
    %500 = vmatpush2.msra.mxu0 0.0
    %501 = vmatprep.subr.mxu0 0.0
    %502 = vmatpush2.msra.mxu0 0.0
    %503 = vmatprep.subr.mxu0 0.0
    %504 = vmatpush2.msra.mxu0 0.0
    %505 = vmatprep.subr.mxu0 0.0
    %506 = vmatpush2.msra.mxu0 0.0
    %507 = vmatprep.subr.mxu0 0.0
    %508 = vmatpush2.msra.mxu0 0.0
    %509 = vmatprep.subr.mxu0 0.0
    %510 = vmatpush2.msra.mxu0 0.0
    %511 = vmatprep.subr.mxu0 0.0
    %512 = vmatpush2.msra.mxu0 0.0
    %513 = vmatprep.subr.mxu0 0.0
    %514 = vmatpush2.msra.mxu0 0.0
    %515 = vmatprep.subr.mxu0 0.0
    %516 = vmatpush2.msra.mxu0 0.0
    %517 = vmatprep.subr.mxu0 0.0
    %518 = vmatpush2.msra.mxu0 0.0
    %519 = vmatprep.subr.mxu0 0.0
    %520 = vmatpush2.msra.mxu0 0.0
    %521 = vmatprep.subr.mxu0 0.0
    %522 = vmatpush2.msra.mxu0 0.0
    %523 = vmatprep.subr.mxu0 0.0
    %524 = vmatpush2.msra.mxu0 0.0
    %525 = vmatprep.mubr.f32.mxu0 0.0
    %526 = vmatmul.mubr.f32.gmra.mxu0 %v459
    %v527 = vpop.f32.mrf.mxu0
    %v528 = vadd.f32 0.0, %v527
    %v529 = vpop.f32.mrf.mxu0
    %530 = vdwg.mxu0
    %531 = vst [vmem:[#allocation7] sm:$0xff] %v455
    %532 = vst [vmem:[#allocation7 + $0x8] sm:$0xff] %v528
    // Predicated region
    $region18: #{tpu_custom_call.1} parent=1 // pred_check
      _
    $region19: #{tpu_custom_call.1} parent=1 // pred_check_branch
      %534 = sbr.rel (0) target = $region21
    $region20: #{tpu_custom_call.1} parent=1 // pred_region
      %s536 = ssub.s32 256, 256
      %537 = vsyncadd [#allocation4], %s536
      %s538 = sshll.u32 [#allocation7], 4
      %s539 = int_to_ptr.vmem [resolvable:$true] %s538
      %544 = dma.vmem_to_hbm [thread:$0]  %s539, 256, %s2, [#allocation4], 128, 128, 8
    $region21: #{tpu_custom_call.1} parent=1 // pred_fallthru
      _
    // Predicated region
    $region22: #{tpu_custom_call.1} parent=1 // pred_check
      _
    $region23: #{tpu_custom_call.1} parent=1 // pred_check_branch
      %546 = sbr.rel (0) target = $region25
    $region24: #{tpu_custom_call.1} parent=1 // pred_region
      %547 = dma.done [#allocation4], 256
    $region25: #{tpu_custom_call.1} parent=1 // pred_fallthru
      _
    %548 = vsyncpa [#allocation3], 1
    %549 = vsyncpa [#allocation6], 1
    %550 = vsyncpa [#allocation4], 1

</llo_original>
